<compile_context>
chip_gen: v5e
topology: v5e:2x2
jax: 0.10.0
libtpu: 0.0.40
codegen_flags: <defaults>
</compile_context>

<pallas_src>
import functools
import math

import jax
import jax.numpy as jnp
from jax import lax
from jax.experimental import pallas as pl
from jax.experimental.pallas import tpu as pltpu


_INV_SQRT2 = 1.0 / math.sqrt(2.0)
_SQRT_2_OVER_PI = math.sqrt(2.0 / math.pi)


def _round_up(x, m):
    return ((x + m - 1) // m) * m


def _gelu(h, approximate):
    if approximate:
        # tanh-approx GELU: the transcendental goes to the EUP (its own VLIW
        # slot) so it is effectively free under an MXU-bound inner loop.
        return 0.5 * h * (1.0 + jnp.tanh(_SQRT_2_OVER_PI * (h + 0.044715 * (h * h * h))))
    # exact GELU (bit-matches torch.nn.GELU(approximate='none')); VALU polynomial.
    return 0.5 * h * (1.0 + lax.erf(h * _INV_SQRT2))


# ----------------------------------------------------------------------------
# Kernels
# ----------------------------------------------------------------------------

def _mlp_kernel_resident(x_ref, w1_ref, b1_ref, w2_ref, b2_ref, o_ref, *,
                         approximate):
    """Whole hidden dim in one step: weights stay VMEM-resident, no accumulator."""
    h = jnp.dot(x_ref[...], w1_ref[...], preferred_element_type=jnp.float32)
    h = _gelu(h + b1_ref[...], approximate)                       # f32 math
    y = jnp.dot(h.astype(w2_ref.dtype), w2_ref[...],
                preferred_element_type=jnp.float32)
    o_ref[...] = (y + b2_ref[...]).astype(o_ref.dtype)


def _mlp_kernel_stream(x_ref, w1_ref, b1_ref, w2_ref, b2_ref, o_ref, acc_ref, *,
                       approximate):
    """Hidden dim streamed in chunks; fc2 partials accumulated in f32 VMEM."""
    h_idx = pl.program_id(1)

    @pl.when(h_idx == 0)
    def _():
        acc_ref[...] = jnp.zeros_like(acc_ref)

    h = jnp.dot(x_ref[...], w1_ref[...], preferred_element_type=jnp.float32)
    h = _gelu(h + b1_ref[...], approximate)
    acc_ref[...] += jnp.dot(h.astype(w2_ref.dtype), w2_ref[...],
                            preferred_element_type=jnp.float32)

    @pl.when(h_idx == pl.num_programs(1) - 1)
    def _():
        o_ref[...] = (acc_ref[...] + b2_ref[...]).astype(o_ref.dtype)


# ----------------------------------------------------------------------------
# Parameter preparation (hoisted out of the per-forward path)
# ----------------------------------------------------------------------------

def prepare_mlp_params(w1, b1, w2, b2, compute_dtype=jnp.bfloat16):
    """Zero-pad feature dims to multiples of 128 and cast weights to the MXU
    dtype ONCE, so every forward call skips weight padding/casting traffic."""
    C, H = w1.shape
    O = w2.shape[1]
    C_pad, H_pad, O_pad = (_round_up(d, 128) for d in (C, H, O))

    def pad2(a, rows, cols):
        a = jnp.asarray(a)
        if a.shape != (rows, cols):
            a = jnp.pad(a, ((0, rows - a.shape[0]), (0, cols - a.shape[1])))
        return a

    w1p = pad2(w1, C_pad, H_pad).astype(compute_dtype)
    w2p = pad2(w2, H_pad, O_pad).astype(compute_dtype)

    b1p = jnp.asarray(b1)
    if b1p.shape[0] != H_pad:
        b1p = jnp.pad(b1p, (0, H_pad - H))
    b1p = b1p.reshape(1, H_pad).astype(jnp.float32)

    b2p = jnp.asarray(b2)
    if b2p.shape[0] != O_pad:
        b2p = jnp.pad(b2p, (0, O_pad - O))
    b2p = b2p.reshape(1, O_pad).astype(jnp.float32)

    return {"w1": w1p, "b1": b1p, "w2": w2p, "b2": b2p, "C": C, "H": H, "O": O}


def _vmem_info():
    """Returns (physical VMEM capacity, planning budget) in bytes."""
    try:
        cap = int(pltpu.get_tpu_info().vmem_capacity_bytes)
    except Exception:
        cap = 64 << 20        # conservative fallback: v7x has the smallest VMEM
    # Leave headroom for Mosaic internal scratch; never plan beyond ~100 MiB
    # even on 128 MiB parts (v5e/v6e).
    budget = max(min(cap - (16 << 20), 100 << 20), 16 << 20)
    return cap, budget


# ----------------------------------------------------------------------------
# Forward
# ----------------------------------------------------------------------------

def mlp_apply(x, params, *, tile_m=512, tile_h=512, approximate_gelu=True):
    """x: (B, N, C); params from prepare_mlp_params()."""
    B, N, C = x.shape
    assert C == params["C"], "feature dim mismatch"
    H, O = params["H"], params["O"]
    w1p, b1p, w2p, b2p = params["w1"], params["b1"], params["w2"], params["b2"]
    C_pad, H_pad = w1p.shape
    O_pad = w2p.shape[1]

    M = B * N
    out_dtype = x.dtype
    compute_dtype = w1p.dtype
    cbytes = jnp.dtype(compute_dtype).itemsize
    obytes = jnp.dtype(out_dtype).itemsize

    cap, budget = _vmem_info()

    # ---- M tile: 128-aligned (full MXU rows / bf16 sublane packing) --------
    tile_m = max(128, _round_up(int(tile_m), 128))
    tm = min(tile_m, _round_up(M, 128))
    # Give v7x's second TensorCore work: split a single-tile "parallel" axis in
    # two when that costs no extra padding (harmless on single-TC v5e/v6e).
    if _round_up(M, tm) // tm == 1 and tm % 256 == 0:
        tm //= 2

    # ---- VMEM need models ---------------------------------------------------
    def need_resident(tm_, wbufs):
        w = wbufs * (C_pad * H_pad + H_pad * O_pad) * cbytes
        act = 2 * tm_ * C_pad * cbytes              # x tile (double-buffered)
        out = 2 * tm_ * O_pad * obytes              # out tile (double-buffered)
        bias = 2 * (H_pad + O_pad) * 4
        inter = tm_ * H_pad * (4 + cbytes)          # f32 GELU + bf16 recast
        return w + act + out + bias + inter

    def need_stream(tm_, th_):
        w = 2 * (C_pad * th_ + th_ * O_pad) * cbytes
        act = 2 * tm_ * C_pad * cbytes
        out = 2 * tm_ * O_pad * obytes
        bias = 2 * (th_ + O_pad) * 4
        acc = tm_ * O_pad * 4
        inter = tm_ * th_ * (4 + cbytes)
        return w + act + out + bias + acc + inter

    def largest_div_tile(cap_):
        """Largest multiple of 128 that divides H_pad and is <= cap_."""
        cap_ = max(128, (cap_ // 128) * 128)
        n = H_pad // 128
        best = 128
        for d in range(1, n + 1):
            if n % d == 0 and d * 128 <= cap_:
                best = d * 128
        return best

    tm_cands = []
    for t in (tm, 256, 128):
        if t <= tm and t not in tm_cands:
            tm_cands.append(t)

    # Prefer weight residency (weights DMA'd exactly once); else stream H.
    plan = None
    for t in tm_cands:
        if need_resident(t, 2) <= budget:
            plan = ("resident", t, H_pad, 2)
            break
        if need_resident(t, 1) <= budget:
            plan = ("resident", t, H_pad, 1)      # single-buffer the weights
            break
    if plan is None:
        tile_h = max(128, _round_up(int(tile_h), 128))
        for t in tm_cands:
            th = largest_div_tile(tile_h)
            while th > 128 and need_stream(t, th) > budget:
                th = largest_div_tile(th - 128)
            if need_stream(t, th) <= budget:
                plan = ("stream", t, th, 2)
                break
    if plan is None:
        plan = ("stream", 128, 128, 2)            # last resort

    mode, tm, th, wbufs = plan
    M_pad = _round_up(M, tm)
    grid_m = M_pad // tm

    # ---- activations: pad M/C (lane-dense blocks) and cast for the MXU -----
    x2 = x.reshape(M, C)
    if (M_pad, C_pad) != (M, C):
        x2 = jnp.pad(x2, ((0, M_pad - M), (0, C_pad - C)))
    x2 = x2.astype(compute_dtype)

    cost = pl.CostEstimate(
        flops=int(2 * M * C * H + 2 * M * H * O),
        transcendentals=int(M * H),
        bytes_accessed=int(M * C * cbytes + C_pad * H_pad * cbytes
                           + H_pad * O_pad * cbytes + (H_pad + O_pad) * 4
                           + M * O * obytes),
    )

    if mode == "resident":
        need = need_resident(tm, wbufs)
        w_kw = {} if wbufs == 2 else {"pipeline_mode": pl.Buffered(1)}
        grid = (grid_m,)
        in_specs = [
            pl.BlockSpec((tm, C_pad), lambda i: (i, 0)),            # x tile
            pl.BlockSpec((C_pad, H_pad), lambda i: (0, 0), **w_kw),  # W1 (resident)
            pl.BlockSpec((1, H_pad), lambda i: (0, 0)),             # b1
            pl.BlockSpec((H_pad, O_pad), lambda i: (0, 0), **w_kw),  # W2 (resident)
            pl.BlockSpec((1, O_pad), lambda i: (0, 0)),             # b2
        ]
        out_specs = pl.BlockSpec((tm, O_pad), lambda i: (i, 0))
        scratch = []
        dims = ("parallel",)
        kernel = functools.partial(_mlp_kernel_resident,
                                   approximate=approximate_gelu)
    else:
        need = need_stream(tm, th)
        grid = (grid_m, H_pad // th)
        in_specs = [
            pl.BlockSpec((tm, C_pad), lambda i, h: (i, 0)),         # x tile
            pl.BlockSpec((C_pad, th), lambda i, h: (0, h)),         # W1 chunk
            pl.BlockSpec((1, th), lambda i, h: (0, h)),             # b1 chunk
            pl.BlockSpec((th, O_pad), lambda i, h: (h, 0)),         # W2 chunk
            pl.BlockSpec((1, O_pad), lambda i, h: (0, 0)),          # b2
        ]
        out_specs = pl.BlockSpec((tm, O_pad), lambda i, h: (i, 0))
        scratch = [pltpu.VMEM((tm, O_pad), jnp.float32)]
        dims = ("parallel", "arbitrary")
        kernel = functools.partial(_mlp_kernel_stream,
                                   approximate=approximate_gelu)

    vmem_limit = int(min(max(need + need // 4 + (4 << 20), 32 << 20),
                         cap - (4 << 20)))

    out2 = pl.pallas_call(
        kernel,
        out_shape=jax.ShapeDtypeStruct((M_pad, O_pad), out_dtype),
        grid_spec=pltpu.PrefetchScalarGridSpec(
            num_scalar_prefetch=0,
            grid=grid,
            in_specs=in_specs,
            out_specs=out_specs,
            scratch_shapes=scratch,
        ),
        compiler_params=pltpu.CompilerParams(
            dimension_semantics=dims,
            vmem_limit_bytes=vmem_limit,
        ),
        cost_estimate=cost,
    )(x2, w1p, b1p, w2p, b2p)

    return out2[:M, :O].reshape(B, N, O)


def mlp_pallas(x, w1, b1, w2, b2, **kwargs):
    """One-shot convenience wrapper (re-prepares parameters every call).

    For repeated calls with fixed weights, call prepare_mlp_params() once and
    use mlp_apply() so weight padding/casting stays out of the forward path."""
    compute_dtype = kwargs.pop("compute_dtype", jnp.bfloat16)
    params = prepare_mlp_params(w1, b1, w2, b2, compute_dtype=compute_dtype)
    return mlp_apply(x, params, **kwargs)


def mlp_reference(x, w1, b1, w2, b2):
    h = jnp.einsum("bnc,ch->bnh", x, w1) + b1
    h = 0.5 * h * (1.0 + lax.erf(h * _INV_SQRT2))   # exact GELU (torch default)
    return jnp.einsum("bnh,ho->bno", h, w2) + b2


if __name__ == "__main__":
    # small shapes consistent with the module's forward
    B, N = 2, 8            # batch, sequence length
    in_features = 32
    hidden_features = 64
    out_features = 32      # out_features defaults to in_features

    key = jax.random.PRNGKey(0)
    kx, k1, k2, k3, k4 = jax.random.split(key, 5)

    x = jax.random.normal(kx, (B, N, in_features), dtype=jnp.float32)

    # deterministic parameter init (Linear-like scaling), stored pre-transposed
    w1 = jax.random.normal(k1, (in_features, hidden_features), jnp.float32) / math.sqrt(in_features)
    b1 = jax.random.normal(k2, (hidden_features,), jnp.float32) * 0.01
    w2 = jax.random.normal(k3, (hidden_features, out_features), jnp.float32) / math.sqrt(hidden_features)
    b2 = jax.random.normal(k4, (out_features,), jnp.float32) * 0.01

    # Dropout(p=0.0) is the identity in the forward pass -> omitted.
    params = prepare_mlp_params(w1, b1, w2, b2)   # pad/cast hoisted out of the call
    y = mlp_apply(x, params)
    jax.block_until_ready(y)

    y_ref = mlp_reference(x, w1, b1, w2, b2)
    assert y.shape == (B, N, out_features)
    # bf16 MXU operands (f32 accumulation) + tanh-approx GELU -> loose tolerance
    assert jnp.allclose(y, y_ref, atol=3e-2, rtol=3e-2), "mismatch vs reference"

    print("KERNEL_OK")
</pallas_src>

<mosaic_0001>
module attributes {stable_mosaic.version = 11 : i64} {
  func.func @_mlp_kernel_resident(%arg0: i32, %arg1: memref<128x128xbf16, #tpu.memory_space<vmem>>, %arg2: memref<128x128xbf16, #tpu.memory_space<vmem>>, %arg3: memref<1x128xf32, #tpu.memory_space<vmem>>, %arg4: memref<128x128xbf16, #tpu.memory_space<vmem>>, %arg5: memref<1x128xf32, #tpu.memory_space<vmem>>, %arg6: memref<128x128xf32, #tpu.memory_space<vmem>>) attributes {dimension_semantics = [#tpu.dimension_semantics<parallel>], iteration_bounds = array<i64: 1>, scalar_prefetch = 0 : i64, scratch_operands = 0 : i64, tpu.core_type = #tpu.core_type<tc>, window_params = [{transform_indices = @transform_0, window_bounds = array<i64: 128, 128>}, {pipeline_mode = #tpu.pipeline_mode<synchronous>, transform_indices = @transform_1, window_bounds = array<i64: 128, 128>}, {pipeline_mode = #tpu.pipeline_mode<synchronous>, transform_indices = @transform_2, window_bounds = array<i64: 1, 128>}, {pipeline_mode = #tpu.pipeline_mode<synchronous>, transform_indices = @transform_3, window_bounds = array<i64: 128, 128>}, {pipeline_mode = #tpu.pipeline_mode<synchronous>, transform_indices = @transform_4, window_bounds = array<i64: 1, 128>}, {transform_indices = @transform_5, window_bounds = array<i64: 128, 128>}]} {
    %c0 = arith.constant 0 : index
    %c0_0 = arith.constant 0 : index
    %0 = vector.load %arg1[%c0, %c0_0] : memref<128x128xbf16, #tpu.memory_space<vmem>>, vector<128x128xbf16>
    %c0_1 = arith.constant 0 : index
    %c0_2 = arith.constant 0 : index
    %1 = vector.load %arg2[%c0_1, %c0_2] : memref<128x128xbf16, #tpu.memory_space<vmem>>, vector<128x128xbf16>
    %cst = arith.constant dense<0.000000e+00> : vector<128x128xf32>
    %2 = tpu.matmul %0, %1, %cst {dimension_numbers = #tpu.dot_dimension_numbers<[1], [0], [0], [1], [0, 0, 1, 1], [], []>} : vector<128x128xbf16>, vector<128x128xbf16>, vector<128x128xf32> -> vector<128x128xf32>
    %c0_3 = arith.constant 0 : index
    %c0_4 = arith.constant 0 : index
    %3 = vector.load %arg3[%c0_3, %c0_4] : memref<1x128xf32, #tpu.memory_space<vmem>>, vector<1x128xf32>
    %4 = vector.broadcast %3 : vector<1x128xf32> to vector<128x128xf32>
    %5 = arith.addf %2, %4 : vector<128x128xf32>
    %cst_5 = arith.constant 5.000000e-01 : f32
    %6 = vector.broadcast %cst_5 : f32 to vector<128x128xf32>
    %7 = arith.mulf %6, %5 : vector<128x128xf32>
    %8 = arith.mulf %5, %5 : vector<128x128xf32>
    %9 = arith.mulf %8, %5 : vector<128x128xf32>
    %cst_6 = arith.constant 4.471500e-02 : f32
    %10 = vector.broadcast %cst_6 : f32 to vector<128x128xf32>
    %11 = arith.mulf %10, %9 : vector<128x128xf32>
    %12 = arith.addf %5, %11 : vector<128x128xf32>
    %cst_7 = arith.constant 0.797884583 : f32
    %13 = vector.broadcast %cst_7 : f32 to vector<128x128xf32>
    %14 = arith.mulf %13, %12 : vector<128x128xf32>
    %15 = math.tanh %14 : vector<128x128xf32>
    %cst_8 = arith.constant 1.000000e+00 : f32
    %16 = vector.broadcast %cst_8 : f32 to vector<128x128xf32>
    %17 = arith.addf %16, %15 : vector<128x128xf32>
    %18 = arith.mulf %7, %17 : vector<128x128xf32>
    %19 = arith.truncf %18 : vector<128x128xf32> to vector<128x128xbf16>
    %c0_9 = arith.constant 0 : index
    %c0_10 = arith.constant 0 : index
    %20 = vector.load %arg4[%c0_9, %c0_10] : memref<128x128xbf16, #tpu.memory_space<vmem>>, vector<128x128xbf16>
    %cst_11 = arith.constant dense<0.000000e+00> : vector<128x128xf32>
    %21 = tpu.matmul %19, %20, %cst_11 {dimension_numbers = #tpu.dot_dimension_numbers<[1], [0], [0], [1], [0, 0, 1, 1], [], []>} : vector<128x128xbf16>, vector<128x128xbf16>, vector<128x128xf32> -> vector<128x128xf32>
    %c0_12 = arith.constant 0 : index
    %c0_13 = arith.constant 0 : index
    %22 = vector.load %arg5[%c0_12, %c0_13] : memref<1x128xf32, #tpu.memory_space<vmem>>, vector<1x128xf32>
    %23 = vector.broadcast %22 : vector<1x128xf32> to vector<128x128xf32>
    %24 = arith.addf %21, %23 : vector<128x128xf32>
    %c0_14 = arith.constant 0 : index
    %c0_15 = arith.constant 0 : index
    %25 = vector.load %arg6[%c0_14, %c0_15] : memref<128x128xf32, #tpu.memory_space<vmem>>, vector<128x128xf32>
    tpu.vector_store %arg6[%c0_14, %c0_15], %24 {strides = array<i32>} : memref<128x128xf32, #tpu.memory_space<vmem>>, vector<128x128xf32>,
    return
  }
  func.func @transform_0(%arg0: i32) -> (i32, i32) {
    %c0_i32 = arith.constant 0 : i32
    %c0_i32_0 = arith.constant 0 : i32
    return %arg0, %c0_i32 : i32, i32
  }
  func.func @transform_1(%arg0: i32) -> (i32, i32) {
    %c0_i32 = arith.constant 0 : i32
    %c0_i32_0 = arith.constant 0 : i32
    %c0_i32_1 = arith.constant 0 : i32
    return %c0_i32, %c0_i32_0 : i32, i32
  }
  func.func @transform_2(%arg0: i32) -> (i32, i32) {
    %c0_i32 = arith.constant 0 : i32
    %c0_i32_0 = arith.constant 0 : i32
    %c0_i32_1 = arith.constant 0 : i32
    return %c0_i32, %c0_i32_0 : i32, i32
  }
  func.func @transform_3(%arg0: i32) -> (i32, i32) {
    %c0_i32 = arith.constant 0 : i32
    %c0_i32_0 = arith.constant 0 : i32
    %c0_i32_1 = arith.constant 0 : i32
    return %c0_i32, %c0_i32_0 : i32, i32
  }
  func.func @transform_4(%arg0: i32) -> (i32, i32) {
    %c0_i32 = arith.constant 0 : i32
    %c0_i32_0 = arith.constant 0 : i32
    %c0_i32_1 = arith.constant 0 : i32
    return %c0_i32, %c0_i32_0 : i32, i32
  }
  func.func @transform_5(%arg0: i32) -> (i32, i32) {
    %c0_i32 = arith.constant 0 : i32
    %c0_i32_0 = arith.constant 0 : i32
    return %arg0, %c0_i32 : i32, i32
  }
}

</mosaic_0001>

<llo_original>
// kernel: tpu_custom_call.1
$region0: #{tpu_custom_call.1}
  #allocation0 [shape = 'u32[]', space=smem, size = 0x4, offset = 0x4, fixed_abs, tag = 'smem constant byte address 0x4 - core index']
  #allocation1 [shape = 'u32[72,128]{1,0:T(1,128)}', space=vmem, size = 0x9000, scoped, tag = 'internal scratch']
  %s0 = inlined_call_operand.hbm [shape: bf16[128,128], index: 0, kind: input, shape index: {}]
  %s1 = inlined_call_operand.hbm [shape: bf16[128,128], index: 1, kind: input, shape index: {}]
  %s2 = inlined_call_operand.vmem [shape: f32[1,128], index: 2, kind: input, shape index: {}]
  %s3 = inlined_call_operand.hbm [shape: bf16[128,128], index: 3, kind: input, shape index: {}]
  %s4 = inlined_call_operand.vmem [shape: f32[1,128], index: 4, kind: input, shape index: {}]
  %s5 = inlined_call_operand.hbm [shape: f32[128,128], index: 5, kind: output, shape index: {}]
  %s6 = sld [smem:[#allocation0]]
  $region42: #{tpu_custom_call.1} parent=0
    _
  %s8 = ssub.s32 1, %s6
  %s9 = scalar_select 0, %s8, %s6
  $region1: #{tpu_custom_call.1} parent=0
    #allocation2 [shape = 'u8[32768]{0}', space=vmem, size = 0x8000, scoped, tag = 'input window, operand 0, single buffered']
    #allocation3 [shape = 's32[1]{0}', space=sflag, size = 0x4, scoped, tag = 'scoped memory for tpu_custom_call.1']
    #allocation4 [shape = 's32[1]{0}', space=sflag, size = 0x4, scoped, tag = 'scoped memory for tpu_custom_call.1']
    #allocation5 [shape = 'u8[32768]{0}', space=vmem, size = 0x8000, scoped, tag = 'input window, operand 1, single buffered']
    #allocation6 [shape = 's32[1]{0}', space=sflag, size = 0x4, scoped, tag = 'scoped memory for tpu_custom_call.1']
    #allocation7 [shape = 'u8[32768]{0}', space=vmem, size = 0x8000, scoped, tag = 'input window, operand 3, single buffered']
    #allocation8 [shape = 'u8[65536]{0}', space=vmem, size = 0x10000, scoped, tag = 'output window, operand 0, single buffered']
    %10 = vsyncpa [#allocation3], 0
    %11 = vsyncpa [#allocation6], 0
    %12 = vsyncpa [#allocation4], 0
    // Predicated region
    $region2: #{tpu_custom_call.1} parent=1 // pred_check
      _
    $region3: #{tpu_custom_call.1} parent=1 // pred_check_branch
      %14 = sbr.rel (0) target = $region5
    $region4: #{tpu_custom_call.1} parent=1 // pred_region
      %16 = vsyncadd [#allocation3], 0
      %s17 = sshll.u32 %s0, 4
      %s18 = int_to_ptr.hbm [resolvable:$true] %s17
      %s19 = sshll.u32 [#allocation2], 4
      %s20 = int_to_ptr.vmem [resolvable:$true] %s19
      %25 = dma.hbm_to_vmem [thread:$0]  %s18, 1024, %s20, [#allocation3], 64, 64, 4
    $region5: #{tpu_custom_call.1} parent=1 // pred_fallthru
      _
    // Predicated region
    $region6: #{tpu_custom_call.1} parent=1 // pred_check
      _
    $region7: #{tpu_custom_call.1} parent=1 // pred_check_branch
      %27 = sbr.rel (0) target = $region9
    $region8: #{tpu_custom_call.1} parent=1 // pred_region
      %29 = vsyncadd [#allocation6], 0
      %s30 = sshll.u32 %s1, 4
      %s31 = int_to_ptr.hbm [resolvable:$true] %s30
      %s32 = sshll.u32 [#allocation5], 4
      %s33 = int_to_ptr.vmem [resolvable:$true] %s32
      %38 = dma.hbm_to_vmem [thread:$0]  %s31, 1024, %s33, [#allocation6], 64, 64, 4
    $region9: #{tpu_custom_call.1} parent=1 // pred_fallthru
      _
    // Predicated region
    $region10: #{tpu_custom_call.1} parent=1 // pred_check
      _
    $region11: #{tpu_custom_call.1} parent=1 // pred_check_branch
      %40 = sbr.rel (0) target = $region13
    $region12: #{tpu_custom_call.1} parent=1 // pred_region
      _
    $region13: #{tpu_custom_call.1} parent=1 // pred_fallthru
      _
    // Predicated region
    $region14: #{tpu_custom_call.1} parent=1 // pred_check
      _
    $region15: #{tpu_custom_call.1} parent=1 // pred_check_branch
      %42 = sbr.rel (0) target = $region17
    $region16: #{tpu_custom_call.1} parent=1 // pred_region
      %44 = vsyncadd [#allocation6], 0
      %s45 = sshll.u32 %s3, 4
      %s46 = int_to_ptr.hbm [resolvable:$true] %s45
      %s47 = sshll.u32 [#allocation7], 4
      %s48 = int_to_ptr.vmem [resolvable:$true] %s47
      %53 = dma.hbm_to_vmem [thread:$0]  %s46, 1024, %s48, [#allocation6], 64, 64, 4
    $region17: #{tpu_custom_call.1} parent=1 // pred_fallthru
      _
    // Predicated region
    $region18: #{tpu_custom_call.1} parent=1 // pred_check
      _
    $region19: #{tpu_custom_call.1} parent=1 // pred_check_branch
      %55 = sbr.rel (0) target = $region21
    $region20: #{tpu_custom_call.1} parent=1 // pred_region
      _
    $region21: #{tpu_custom_call.1} parent=1 // pred_fallthru
      _
    // Predicated region
    $region22: #{tpu_custom_call.1} parent=1 // pred_check
      _
    $region23: #{tpu_custom_call.1} parent=1 // pred_check_branch
      %57 = sbr.rel (0) target = $region25
    $region24: #{tpu_custom_call.1} parent=1 // pred_region
      %59 = dma.done [#allocation3], 1024
    $region25: #{tpu_custom_call.1} parent=1 // pred_fallthru
      _
    // Predicated region
    $region26: #{tpu_custom_call.1} parent=1 // pred_check
      _
    $region27: #{tpu_custom_call.1} parent=1 // pred_check_branch
      %61 = sbr.rel (0) target = $region29
    $region28: #{tpu_custom_call.1} parent=1 // pred_region
      %63 = dma.done [#allocation6], 1024
    $region29: #{tpu_custom_call.1} parent=1 // pred_fallthru
      _
    // Predicated region
    $region30: #{tpu_custom_call.1} parent=1 // pred_check
      _
    $region31: #{tpu_custom_call.1} parent=1 // pred_check_branch
      %65 = sbr.rel (0) target = $region33
    $region32: #{tpu_custom_call.1} parent=1 // pred_region
      %67 = dma.done [#allocation6], 1024
    $region33: #{tpu_custom_call.1} parent=1 // pred_fallthru
      _
    %v68 = vld [vmem:[#allocation2] sm:$0xf]
    %v69 = vld [vmem:[#allocation2 + $0x4] sm:$0xf]
    %v70 = vld [vmem:[#allocation2 + $0x8] sm:$0xf]
    %v71 = vld [vmem:[#allocation2 + $0xc] sm:$0xf]
    %v72 = vld [vmem:[#allocation2 + $0x10] sm:$0xf]
    %v73 = vld [vmem:[#allocation2 + $0x14] sm:$0xf]
    %v74 = vld [vmem:[#allocation2 + $0x18] sm:$0xf]
    %v75 = vld [vmem:[#allocation2 + $0x1c] sm:$0xf]
    %v76 = vld [vmem:[#allocation2 + $0x20] sm:$0xf]
    %v77 = vld [vmem:[#allocation2 + $0x24] sm:$0xf]
    %v78 = vld [vmem:[#allocation2 + $0x28] sm:$0xf]
    %v79 = vld [vmem:[#allocation2 + $0x2c] sm:$0xf]
    %v80 = vld [vmem:[#allocation2 + $0x30] sm:$0xf]
    %v81 = vld [vmem:[#allocation2 + $0x34] sm:$0xf]
    %v82 = vld [vmem:[#allocation2 + $0x38] sm:$0xf]
    %v83 = vld [vmem:[#allocation2 + $0x3c] sm:$0xf]
    %v84 = vld [vmem:[#allocation5] sm:$0xf]
    %v85 = vld [vmem:[#allocation5 + $0x4] sm:$0xf]
    %v86 = vld [vmem:[#allocation5 + $0x8] sm:$0xf]
    %v87 = vld [vmem:[#allocation5 + $0xc] sm:$0xf]
    %v88 = vld [vmem:[#allocation5 + $0x10] sm:$0xf]
    %v89 = vld [vmem:[#allocation5 + $0x14] sm:$0xf]
    %v90 = vld [vmem:[#allocation5 + $0x18] sm:$0xf]
    %v91 = vld [vmem:[#allocation5 + $0x1c] sm:$0xf]
    %v92 = vld [vmem:[#allocation5 + $0x20] sm:$0xf]
    %v93 = vld [vmem:[#allocation5 + $0x24] sm:$0xf]
    %v94 = vld [vmem:[#allocation5 + $0x28] sm:$0xf]
    %v95 = vld [vmem:[#allocation5 + $0x2c] sm:$0xf]
    %v96 = vld [vmem:[#allocation5 + $0x30] sm:$0xf]
    %v97 = vld [vmem:[#allocation5 + $0x34] sm:$0xf]
    %v98 = vld [vmem:[#allocation5 + $0x38] sm:$0xf]
    %v99 = vld [vmem:[#allocation5 + $0x3c] sm:$0xf]
    %v100 = vld [vmem:[%s2] sm:$0x1]
    %v102 = vperm.slane %v100, 0
    %v120 = vunpack.c.l.b16 %v68
    %v121 = vunpack.c.l.b16 %v69
    %v122 = vunpack.c.l.b16 %v70
    %v123 = vunpack.c.l.b16 %v71
    %v124 = vunpack.c.l.b16 %v72
    %v125 = vunpack.c.l.b16 %v73
    %v126 = vunpack.c.l.b16 %v74
    %v127 = vunpack.c.l.b16 %v75
    %v128 = vunpack.c.l.b16 %v76
    %v129 = vunpack.c.l.b16 %v77
    %v130 = vunpack.c.l.b16 %v78
    %v131 = vunpack.c.l.b16 %v79
    %v132 = vunpack.c.l.b16 %v80
    %v133 = vunpack.c.l.b16 %v81
    %v134 = vunpack.c.l.b16 %v82
    %v135 = vunpack.c.l.b16 %v83
    %v136 = vpack.c.b16 %v121, %v120
    %v137 = vpack.c.b16 %v123, %v122
    %v138 = vpack.c.b16 %v125, %v124
    %v139 = vpack.c.b16 %v127, %v126
    %v140 = vpack.c.b16 %v129, %v128
    %v141 = vpack.c.b16 %v131, %v130
    %v142 = vpack.c.b16 %v133, %v132
    %v143 = vpack.c.b16 %v135, %v134
    %v168 = vunpack.c.l.b16 %v84
    %v169 = vunpack.c.l.b16 %v85
    %v170 = vunpack.c.l.b16 %v86
    %v171 = vunpack.c.l.b16 %v87
    %v172 = vunpack.c.l.b16 %v88
    %v173 = vunpack.c.l.b16 %v89
    %v174 = vunpack.c.l.b16 %v90
    %v175 = vunpack.c.l.b16 %v91
    %v176 = vunpack.c.l.b16 %v92
    %v177 = vunpack.c.l.b16 %v93
    %v178 = vunpack.c.l.b16 %v94
    %v179 = vunpack.c.l.b16 %v95
    %v180 = vunpack.c.l.b16 %v96
    %v181 = vunpack.c.l.b16 %v97
    %v182 = vunpack.c.l.b16 %v98
    %v183 = vunpack.c.l.b16 %v99
    %v184 = vpack.c.b16 %v169, %v168
    %v185 = vpack.c.b16 %v171, %v170
    %v186 = vpack.c.b16 %v173, %v172
    %v187 = vpack.c.b16 %v175, %v174
    %v188 = vpack.c.b16 %v177, %v176
    %v189 = vpack.c.b16 %v179, %v178
    %v190 = vpack.c.b16 %v181, %v180
    %v191 = vpack.c.b16 %v183, %v182
    %200 = vmatpush.bf16.msra.mxu0 %v191
    %201 = vmatpush.bf16.msra.mxu0 %v190
    %202 = vmatpush.bf16.msra.mxu0 %v189
    %203 = vmatpush.bf16.msra.mxu0 %v188
    %204 = vmatpush.bf16.msra.mxu0 %v187
    %205 = vmatpush.bf16.msra.mxu0 %v186
    %206 = vmatpush.bf16.msra.mxu0 %v185
    %207 = vmatpush.bf16.msra.mxu0 %v184
    %208 = vmatmul.bf16.gmra.mxu0 %v136
    %v209 = vpop.f32.mrf.mxu0
    %v210 = vadd.f32 %v102, %v209
    %v211 = vpop.f32.mrf.mxu0
    %v212 = vadd.f32 %v102, %v211
    %213 = vmatmul.bf16.gmra.mxu0 %v137
    %v214 = vpop.f32.mrf.mxu0
    %v215 = vadd.f32 %v102, %v214
    %v216 = vpop.f32.mrf.mxu0
    %v217 = vadd.f32 %v102, %v216
    %218 = vmatmul.bf16.gmra.mxu0 %v138
    %v219 = vpop.f32.mrf.mxu0
    %v220 = vadd.f32 %v102, %v219
    %v221 = vpop.f32.mrf.mxu0
    %v222 = vadd.f32 %v102, %v221
    %223 = vmatmul.bf16.gmra.mxu0 %v139
    %v224 = vpop.f32.mrf.mxu0
    %v225 = vadd.f32 %v102, %v224
    %v226 = vpop.f32.mrf.mxu0
    %v227 = vadd.f32 %v102, %v226
    %228 = vmatmul.bf16.gmra.mxu0 %v140
    %v229 = vpop.f32.mrf.mxu0
    %v230 = vadd.f32 %v102, %v229
    %v231 = vpop.f32.mrf.mxu0
    %v232 = vadd.f32 %v102, %v231
    %233 = vmatmul.bf16.gmra.mxu0 %v141
    %v234 = vpop.f32.mrf.mxu0
    %v235 = vadd.f32 %v102, %v234
    %v236 = vpop.f32.mrf.mxu0
    %v237 = vadd.f32 %v102, %v236
    %238 = vmatmul.bf16.gmra.mxu0 %v142
    %v239 = vpop.f32.mrf.mxu0
    %v240 = vadd.f32 %v102, %v239
    %v241 = vpop.f32.mrf.mxu0
    %v242 = vadd.f32 %v102, %v241
    %243 = vmatmul.bf16.gmra.mxu0 %v143
    %v244 = vpop.f32.mrf.mxu0
    %v245 = vadd.f32 %v102, %v244
    %v246 = vpop.f32.mrf.mxu0
    %v247 = vadd.f32 %v102, %v246
    %248 = vdwg.mxu0
    %v249 = vmul.f32 %v210, 0.5
    %v250 = vmul.f32 %v212, 0.5
    %v251 = vmul.f32 %v215, 0.5
    %v252 = vmul.f32 %v217, 0.5
    %v253 = vmul.f32 %v220, 0.5
    %v254 = vmul.f32 %v222, 0.5
    %v255 = vmul.f32 %v225, 0.5
    %v256 = vmul.f32 %v227, 0.5
    %v257 = vmul.f32 %v230, 0.5
    %v258 = vmul.f32 %v232, 0.5
    %v259 = vmul.f32 %v235, 0.5
    %v260 = vmul.f32 %v237, 0.5
    %v261 = vmul.f32 %v240, 0.5
    %v262 = vmul.f32 %v242, 0.5
    %v263 = vmul.f32 %v245, 0.5
    %v264 = vmul.f32 %v247, 0.5
    %v265 = vmul.f32 %v210, %v210
    %v266 = vmul.f32 %v212, %v212
    %v267 = vmul.f32 %v215, %v215
    %v268 = vmul.f32 %v217, %v217
    %v269 = vmul.f32 %v220, %v220
    %v270 = vmul.f32 %v222, %v222
    %v271 = vmul.f32 %v225, %v225
    %v272 = vmul.f32 %v227, %v227
    %v273 = vmul.f32 %v230, %v230
    %v274 = vmul.f32 %v232, %v232
    %v275 = vmul.f32 %v235, %v235
    %v276 = vmul.f32 %v237, %v237
    %v277 = vmul.f32 %v240, %v240
    %v278 = vmul.f32 %v242, %v242
    %v279 = vmul.f32 %v245, %v245
    %v280 = vmul.f32 %v247, %v247
    %v281 = vmul.f32 %v265, %v210
    %v282 = vmul.f32 %v266, %v212
    %v283 = vmul.f32 %v267, %v215
    %v284 = vmul.f32 %v268, %v217
    %v285 = vmul.f32 %v269, %v220
    %v286 = vmul.f32 %v270, %v222
    %v287 = vmul.f32 %v271, %v225
    %v288 = vmul.f32 %v272, %v227
    %v289 = vmul.f32 %v273, %v230
    %v290 = vmul.f32 %v274, %v232
    %v291 = vmul.f32 %v275, %v235
    %v292 = vmul.f32 %v276, %v237
    %v293 = vmul.f32 %v277, %v240
    %v294 = vmul.f32 %v278, %v242
    %v295 = vmul.f32 %v279, %v245
    %v296 = vmul.f32 %v280, %v247
    %v297 = vmul.f32 %v281, 0.044715
    %v298 = vmul.f32 %v282, 0.044715
    %v299 = vmul.f32 %v283, 0.044715
    %v300 = vmul.f32 %v284, 0.044715
    %v301 = vmul.f32 %v285, 0.044715
    %v302 = vmul.f32 %v286, 0.044715
    %v303 = vmul.f32 %v287, 0.044715
    %v304 = vmul.f32 %v288, 0.044715
    %v305 = vmul.f32 %v289, 0.044715
    %v306 = vmul.f32 %v290, 0.044715
    %v307 = vmul.f32 %v291, 0.044715
    %v308 = vmul.f32 %v292, 0.044715
    %v309 = vmul.f32 %v293, 0.044715
    %v310 = vmul.f32 %v294, 0.044715
    %v311 = vmul.f32 %v295, 0.044715
    %v312 = vmul.f32 %v296, 0.044715
    %v313 = vadd.f32 %v210, %v297
    %v314 = vadd.f32 %v212, %v298
    %v315 = vadd.f32 %v215, %v299
    %v316 = vadd.f32 %v217, %v300
    %v317 = vadd.f32 %v220, %v301
    %v318 = vadd.f32 %v222, %v302
    %v319 = vadd.f32 %v225, %v303
    %v320 = vadd.f32 %v227, %v304
    %v321 = vadd.f32 %v230, %v305
    %v322 = vadd.f32 %v232, %v306
    %v323 = vadd.f32 %v235, %v307
    %v324 = vadd.f32 %v237, %v308
    %v325 = vadd.f32 %v240, %v309
    %v326 = vadd.f32 %v242, %v310
    %v327 = vadd.f32 %v245, %v311
    %v328 = vadd.f32 %v247, %v312
    %v329 = vmul.f32 %v313, 0.7978846
    %v330 = vmul.f32 %v314, 0.7978846
    %v331 = vmul.f32 %v315, 0.7978846
    %v332 = vmul.f32 %v316, 0.7978846
    %v333 = vmul.f32 %v317, 0.7978846
    %v334 = vmul.f32 %v318, 0.7978846
    %v335 = vmul.f32 %v319, 0.7978846
    %v336 = vmul.f32 %v320, 0.7978846
    %v337 = vmul.f32 %v321, 0.7978846
    %v338 = vmul.f32 %v322, 0.7978846
    %v339 = vmul.f32 %v323, 0.7978846
    %v340 = vmul.f32 %v324, 0.7978846
    %v341 = vmul.f32 %v325, 0.7978846
    %v342 = vmul.f32 %v326, 0.7978846
    %v343 = vmul.f32 %v327, 0.7978846
    %v344 = vmul.f32 %v328, 0.7978846
    %v345 = vtanh.pop %v329
    %v346 = vtanh.pop %v330
    %v347 = vtanh.pop %v331
    %v348 = vtanh.pop %v332
    %v349 = vtanh.pop %v333
    %v350 = vtanh.pop %v334
    %v351 = vtanh.pop %v335
    %v352 = vtanh.pop %v336
    %v353 = vtanh.pop %v337
    %v354 = vtanh.pop %v338
    %v355 = vtanh.pop %v339
    %v356 = vtanh.pop %v340
    %v357 = vtanh.pop %v341
    %v358 = vtanh.pop %v342
    %v359 = vtanh.pop %v343
    %v360 = vtanh.pop %v344
    %v361 = vadd.f32 %v345, 1.0
    %v362 = vadd.f32 %v346, 1.0
    %v363 = vadd.f32 %v347, 1.0
    %v364 = vadd.f32 %v348, 1.0
    %v365 = vadd.f32 %v349, 1.0
    %v366 = vadd.f32 %v350, 1.0
    %v367 = vadd.f32 %v351, 1.0
    %v368 = vadd.f32 %v352, 1.0
    %v369 = vadd.f32 %v353, 1.0
    %v370 = vadd.f32 %v354, 1.0
    %v371 = vadd.f32 %v355, 1.0
    %v372 = vadd.f32 %v356, 1.0
    %v373 = vadd.f32 %v357, 1.0
    %v374 = vadd.f32 %v358, 1.0
    %v375 = vadd.f32 %v359, 1.0
    %v376 = vadd.f32 %v360, 1.0
    %v377 = vmul.f32 %v249, %v361
    %v378 = vmul.f32 %v250, %v362
    %v379 = vmul.f32 %v251, %v363
    %v380 = vmul.f32 %v252, %v364
    %v381 = vmul.f32 %v253, %v365
    %v382 = vmul.f32 %v254, %v366
    %v383 = vmul.f32 %v255, %v367
    %v384 = vmul.f32 %v256, %v368
    %v385 = vmul.f32 %v257, %v369
    %v386 = vmul.f32 %v258, %v370
    %v387 = vmul.f32 %v259, %v371
    %v388 = vmul.f32 %v260, %v372
    %v389 = vmul.f32 %v261, %v373
    %v390 = vmul.f32 %v262, %v374
    %v391 = vmul.f32 %v263, %v375
    %v392 = vmul.f32 %v264, %v376
    %v393 = vpack.c.bf16 %v378, %v377
    %v394 = vpack.c.bf16 %v380, %v379
    %v395 = vpack.c.bf16 %v382, %v381
    %v396 = vpack.c.bf16 %v384, %v383
    %v397 = vpack.c.bf16 %v386, %v385
    %v398 = vpack.c.bf16 %v388, %v387
    %v399 = vpack.c.bf16 %v390, %v389
    %v400 = vpack.c.bf16 %v392, %v391
    %v401 = vld [vmem:[#allocation7] sm:$0xf]
    %v402 = vld [vmem:[#allocation7 + $0x4] sm:$0xf]
    %v403 = vld [vmem:[#allocation7 + $0x8] sm:$0xf]
    %v404 = vld [vmem:[#allocation7 + $0xc] sm:$0xf]
    %v405 = vld [vmem:[#allocation7 + $0x10] sm:$0xf]
    %v406 = vld [vmem:[#allocation7 + $0x14] sm:$0xf]
    %v407 = vld [vmem:[#allocation7 + $0x18] sm:$0xf]
    %v408 = vld [vmem:[#allocation7 + $0x1c] sm:$0xf]
    %v409 = vld [vmem:[#allocation7 + $0x20] sm:$0xf]
    %v410 = vld [vmem:[#allocation7 + $0x24] sm:$0xf]
    %v411 = vld [vmem:[#allocation7 + $0x28] sm:$0xf]
    %v412 = vld [vmem:[#allocation7 + $0x2c] sm:$0xf]
    %v413 = vld [vmem:[#allocation7 + $0x30] sm:$0xf]
    %v414 = vld [vmem:[#allocation7 + $0x34] sm:$0xf]
    %v415 = vld [vmem:[#allocation7 + $0x38] sm:$0xf]
    %v416 = vld [vmem:[#allocation7 + $0x3c] sm:$0xf]
    %v417 = vld [vmem:[%s4] sm:$0x1]
    %v419 = vperm.slane %v417, 0
    %v437 = vunpack.c.l.b16 %v401
    %v438 = vunpack.c.l.b16 %v402
    %v439 = vunpack.c.l.b16 %v403
    %v440 = vunpack.c.l.b16 %v404
    %v441 = vunpack.c.l.b16 %v405
    %v442 = vunpack.c.l.b16 %v406
    %v443 = vunpack.c.l.b16 %v407
    %v444 = vunpack.c.l.b16 %v408
    %v445 = vunpack.c.l.b16 %v409
    %v446 = vunpack.c.l.b16 %v410
    %v447 = vunpack.c.l.b16 %v411
    %v448 = vunpack.c.l.b16 %v412
    %v449 = vunpack.c.l.b16 %v413
    %v450 = vunpack.c.l.b16 %v414
    %v451 = vunpack.c.l.b16 %v415
    %v452 = vunpack.c.l.b16 %v416
    %v453 = vpack.c.b16 %v438, %v437
    %v454 = vpack.c.b16 %v440, %v439
    %v455 = vpack.c.b16 %v442, %v441
    %v456 = vpack.c.b16 %v444, %v443
    %v457 = vpack.c.b16 %v446, %v445
    %v458 = vpack.c.b16 %v448, %v447
    %v459 = vpack.c.b16 %v450, %v449
    %v460 = vpack.c.b16 %v452, %v451
    %469 = vmatpush.bf16.msra.mxu0 %v460
    %470 = vmatpush.bf16.msra.mxu0 %v459
    %471 = vmatpush.bf16.msra.mxu0 %v458
    %472 = vmatpush.bf16.msra.mxu0 %v457
    %473 = vmatpush.bf16.msra.mxu0 %v456
    %474 = vmatpush.bf16.msra.mxu0 %v455
    %475 = vmatpush.bf16.msra.mxu0 %v454
    %476 = vmatpush.bf16.msra.mxu0 %v453
    %477 = vmatmul.bf16.gmra.mxu0 %v393
    %v478 = vpop.f32.mrf.mxu0
    %v479 = vadd.f32 %v419, %v478
    %v480 = vpop.f32.mrf.mxu0
    %v481 = vadd.f32 %v419, %v480
    %482 = vmatmul.bf16.gmra.mxu0 %v394
    %v483 = vpop.f32.mrf.mxu0
    %v484 = vadd.f32 %v419, %v483
    %v485 = vpop.f32.mrf.mxu0
    %v486 = vadd.f32 %v419, %v485
    %487 = vmatmul.bf16.gmra.mxu0 %v395
    %v488 = vpop.f32.mrf.mxu0
    %v489 = vadd.f32 %v419, %v488
    %v490 = vpop.f32.mrf.mxu0
    %v491 = vadd.f32 %v419, %v490
    %492 = vmatmul.bf16.gmra.mxu0 %v396
    %v493 = vpop.f32.mrf.mxu0
    %v494 = vadd.f32 %v419, %v493
    %v495 = vpop.f32.mrf.mxu0
    %v496 = vadd.f32 %v419, %v495
    %497 = vmatmul.bf16.gmra.mxu0 %v397
    %v498 = vpop.f32.mrf.mxu0
    %v499 = vadd.f32 %v419, %v498
    %v500 = vpop.f32.mrf.mxu0
    %v501 = vadd.f32 %v419, %v500
    %502 = vmatmul.bf16.gmra.mxu0 %v398
    %v503 = vpop.f32.mrf.mxu0
    %v504 = vadd.f32 %v419, %v503
    %v505 = vpop.f32.mrf.mxu0
    %v506 = vadd.f32 %v419, %v505
    %507 = vmatmul.bf16.gmra.mxu0 %v399
    %v508 = vpop.f32.mrf.mxu0
    %v509 = vadd.f32 %v419, %v508
    %v510 = vpop.f32.mrf.mxu0
    %v511 = vadd.f32 %v419, %v510
    %512 = vmatmul.bf16.gmra.mxu0 %v400
    %v513 = vpop.f32.mrf.mxu0
    %v514 = vadd.f32 %v419, %v513
    %v515 = vpop.f32.mrf.mxu0
    %v516 = vadd.f32 %v419, %v515
    %517 = vdwg.mxu0
    %518 = vst [vmem:[#allocation8] sm:$0xff] %v479
    %519 = vst [vmem:[#allocation8 + $0x8] sm:$0xff] %v481
    %520 = vst [vmem:[#allocation8 + $0x10] sm:$0xff] %v484
    %521 = vst [vmem:[#allocation8 + $0x18] sm:$0xff] %v486
    %522 = vst [vmem:[#allocation8 + $0x20] sm:$0xff] %v489
    %523 = vst [vmem:[#allocation8 + $0x28] sm:$0xff] %v491
    %524 = vst [vmem:[#allocation8 + $0x30] sm:$0xff] %v494
    %525 = vst [vmem:[#allocation8 + $0x38] sm:$0xff] %v496
    %526 = vst [vmem:[#allocation8 + $0x40] sm:$0xff] %v499
    %527 = vst [vmem:[#allocation8 + $0x48] sm:$0xff] %v501
    %528 = vst [vmem:[#allocation8 + $0x50] sm:$0xff] %v504
    %529 = vst [vmem:[#allocation8 + $0x58] sm:$0xff] %v506
    %530 = vst [vmem:[#allocation8 + $0x60] sm:$0xff] %v509
    %531 = vst [vmem:[#allocation8 + $0x68] sm:$0xff] %v511
    %532 = vst [vmem:[#allocation8 + $0x70] sm:$0xff] %v514
    %533 = vst [vmem:[#allocation8 + $0x78] sm:$0xff] %v516
    // Predicated region
    $region34: #{tpu_custom_call.1} parent=1 // pred_check
      _
    $region35: #{tpu_custom_call.1} parent=1 // pred_check_branch
      %535 = sbr.rel (0) target = $region37
    $region36: #{tpu_custom_call.1} parent=1 // pred_region
      %537 = vsyncadd [#allocation4], 0
      %s538 = sshll.u32 [#allocation8], 4
      %s539 = int_to_ptr.vmem [resolvable:$true] %s538
      %s540 = sshll.u32 %s5, 4
      %s541 = int_to_ptr.hbm [resolvable:$true] %s540
      %546 = dma.vmem_to_hbm [thread:$0]  %s539, 2048, %s541, [#allocation4], 128, 128, 8
    $region37: #{tpu_custom_call.1} parent=1 // pred_fallthru
      _
    // Predicated region
    $region38: #{tpu_custom_call.1} parent=1 // pred_check
      _
    $region39: #{tpu_custom_call.1} parent=1 // pred_check_branch
      %548 = sbr.rel (0) target = $region41
    $region40: #{tpu_custom_call.1} parent=1 // pred_region
      %550 = dma.done [#allocation4], 2048
    $region41: #{tpu_custom_call.1} parent=1 // pred_fallthru
      _
    %551 = vsyncpa [#allocation3], 1
    %552 = vsyncpa [#allocation6], 1
    %553 = vsyncpa [#allocation4], 1

</llo_original>
